<compile_context>
chip_gen: v7x
topology: tpu7x:2x2x1
jax: 0.10.0
libtpu: 0.0.40
codegen_flags: <defaults>
</compile_context>

<pallas_src>
import functools

import jax
import jax.numpy as jnp
from jax import lax
from jax.experimental import pallas as pl
from jax.experimental.pallas import tpu as pltpu


def _int_pow(v, n):
    """v ** n for a static non-negative integer n via repeated squaring.

    VPU-only (keeps the single EUP slot free for the one log per element)."""
    n = int(n)
    if n == 0:
        return jnp.ones_like(v)
    acc = None
    base = v
    while n:
        if n & 1:
            acc = base if acc is None else acc * base
        n >>= 1
        if n:
            base = base * base
    return acc


def _asl_kernel(x_ref, y_ref, out_ref, *,
                gamma_neg, gamma_pos, clip, eps,
                n_rows, block_rows, strip_rows, needs_mask):
    assert block_rows % strip_rows == 0
    n_strips = block_rows // strip_rows           # static
    lanes = out_ref.shape[-1]
    # Valid rows in this block (>= block_rows for every block but a ragged tail).
    rows_valid = n_rows - pl.program_id(0) * block_rows

    def _off(s):
        r0 = s * strip_rows
        return r0 if isinstance(r0, int) else pl.multiple_of(r0, strip_rows)

    def strip_loss(r0):
        # Stream native dtypes; upcast x once per strip (all math in f32 --
        # v5e has no bf16 VPU/EUP).  y is only ever a predicate: never upcast.
        xs = x_ref[pl.ds(r0, strip_rows), :].astype(jnp.float32)
        ys = y_ref[pl.ds(r0, strip_rows), :]
        if ys.dtype == jnp.bool_:
            is_pos = ys
        elif jnp.issubdtype(ys.dtype, jnp.floating):
            is_pos = ys > 0.5
        else:
            is_pos = ys != 0

        xs_neg = 1.0 - xs
        if clip is not None and clip > 0:
            xs_neg = jnp.minimum(xs_neg + clip, 1.0)   # (xs_neg + clip).clamp(max=1)

        # TODO(synk): the fused select form assumes binarized targets y in {0,1}
        # (as the module documents); soft labels would need the blend form.
        pt = jnp.where(is_pos, xs, xs_neg)             # xs_pos*y + xs_neg*(1-y)
        loss = jnp.log(jnp.maximum(pt, eps))           # los_pos + los_neg (1 EUP op)

        if gamma_pos > 0 or gamma_neg > 0:
            omp = 1.0 - pt
            if float(gamma_pos).is_integer() and float(gamma_neg).is_integer():
                w_pos = _int_pow(omp, gamma_pos) if gamma_pos > 0 else 1.0
                w_neg = _int_pow(omp, gamma_neg) if gamma_neg > 0 else 1.0
                w = jnp.where(is_pos, w_pos, w_neg)
            else:
                # Non-integer gammas only: pow = exp+log on the EUP.
                gamma = jnp.where(is_pos, float(gamma_pos), float(gamma_neg))
                w = jnp.power(omp, gamma)
            loss = loss * w
        return loss

    def plain_body(s, acc):
        r0 = _off(s)
        return acc + jnp.sum(strip_loss(r0), axis=0, keepdims=True)

    def masked_body(s, acc):
        r0 = _off(s)
        loss = strip_loss(r0)
        rid = lax.broadcasted_iota(jnp.int32, loss.shape, 0) + r0
        # select (not multiply-by-mask): Pallas-padded rows hold undefined data
        # that may be NaN/Inf; select discards the unselected operand.
        loss = jnp.where(rid < rows_valid, loss, 0.0)
        return acc + jnp.sum(loss, axis=0, keepdims=True)

    acc = jnp.zeros((1, lanes), jnp.float32)
    if needs_mask:
        # Gate the tail-row mask: strips fully inside the valid range run the
        # unmasked path; only boundary/padded strips pay iota+compare+select.
        n_full = jnp.minimum(jnp.maximum(rows_valid // strip_rows, 0), n_strips)
        acc = lax.fori_loop(0, n_full, plain_body, acc)
        acc = lax.fori_loop(n_full, n_strips, masked_body, acc)
    else:
        if n_strips == 1:
            acc = plain_body(0, acc)
        else:
            acc = lax.fori_loop(0, n_strips, plain_body, acc)

    out_ref[...] = acc[None]                           # (1, 1, lanes)


def _lane_dense_slab(x, y):
    """Reshape to a lane-dense 2D slab (R, W) with W % 128 == 0 when free."""
    n, c = x.shape
    if c % 128 == 0:
        return x, y, n, c
    total = n * c
    for w in (512, 256, 1024, 128, 2048):
        if total % w == 0:
            r = total // w
            return x.reshape(r, w), y.reshape(r, w), r, w
    # Fallback: keep (N, C); Mosaic pads the lane dim (wasteful but correct).
    return x, y, n, c


def _plan(n_rows, width, itemsize_sum, target_block_bytes, strip_rows):
    """Choose (block_rows, strip_rows, num_blocks, needs_mask)."""
    if strip_rows is None:
        # Bound every f32 intermediate to ~512 KiB of VMEM.
        strip_rows = (1 << 17) // max(width, 1)
    strip_rows = max(8, (int(strip_rows) // 8) * 8)

    # HBM bytes per grid step (x block + y block) ~= target_block_bytes,
    # sized from the real input itemsizes.
    budget_rows = max(1, int(target_block_bytes) // (width * itemsize_sum))
    block_rows = max(strip_rows, (budget_rows // strip_rows) * strip_rows)

    # v7x megacore: if everything would fit in one block, split into two
    # 8-aligned blocks (free on the single-TC v5e/v6e parts).
    if block_rows >= n_rows and n_rows >= 2 * strip_rows:
        half = -(-n_rows // 2)
        block_rows = (-(-half // strip_rows)) * strip_rows

    if block_rows >= n_rows:
        # Single full-extent block (always legal) and a single strip.
        return n_rows, n_rows, 1, False

    num_blocks = pl.cdiv(n_rows, block_rows)
    needs_mask = (n_rows % block_rows) != 0
    return block_rows, strip_rows, num_blocks, needs_mask


def asymmetric_loss(x, y, *, gamma_neg=4.0, gamma_pos=1.0, clip=0.05, eps=1e-8,
                    target_block_bytes=8 << 20, strip_rows=None):
    """-mean(asymmetric focal loss); matches the module (no sigmoid applied)."""
    assert x.shape == y.shape
    if x.ndim == 1:
        x = x.reshape(1, -1)
        y = y.reshape(1, -1)
    elif x.ndim > 2:
        c = x.shape[-1]
        x = x.reshape(-1, c)
        y = y.reshape(-1, c)
    total = x.size

    x2, y2, n_rows, width = _lane_dense_slab(x, y)
    block_rows, strip_rows_, num_blocks, needs_mask = _plan(
        n_rows, width, x2.dtype.itemsize + y2.dtype.itemsize,
        target_block_bytes, strip_rows)

    kernel = functools.partial(
        _asl_kernel,
        gamma_neg=float(gamma_neg), gamma_pos=float(gamma_pos),
        clip=clip, eps=float(eps),
        n_rows=n_rows, block_rows=block_rows, strip_rows=strip_rows_,
        needs_mask=needs_mask)

    partials = pl.pallas_call(
        kernel,
        out_shape=jax.ShapeDtypeStruct((num_blocks, 1, width), jnp.float32),
        grid_spec=pltpu.PrefetchScalarGridSpec(
            num_scalar_prefetch=0,
            grid=(num_blocks,),
            in_specs=[
                pl.BlockSpec((block_rows, width), lambda i: (i, 0)),
                pl.BlockSpec((block_rows, width), lambda i: (i, 0)),
            ],
            out_specs=pl.BlockSpec((1, 1, width), lambda i: (i, 0, 0)),
        ),
        compiler_params=pltpu.CompilerParams(
            dimension_semantics=("parallel",),     # independent blocks
            vmem_limit_bytes=64 << 20,             # safe on v5e/v6e/v7x
        ),
    )(x2, y2)          # native dtypes streamed; no wrapper-side astype

    # Tiny epilogue in JAX: -mean = -(sum of partials) / (N*C).
    return -(jnp.sum(partials) * (1.0 / total))


def _reference(x, y, gamma_neg=4.0, gamma_pos=1.0, clip=0.05, eps=1e-8):
    x = x.astype(jnp.float32)
    y = y.astype(jnp.float32)
    xs_pos = x
    xs_neg = 1.0 - x
    if clip is not None and clip > 0:
        xs_neg = jnp.minimum(xs_neg + clip, 1.0)
    los_pos = y * jnp.log(jnp.maximum(xs_pos, eps))
    los_neg = (1.0 - y) * jnp.log(jnp.maximum(xs_neg, eps))
    loss = los_pos + los_neg
    if gamma_neg > 0 or gamma_pos > 0:
        pt = xs_pos * y + xs_neg * (1.0 - y)
        gamma = gamma_pos * y + gamma_neg * (1.0 - y)
        loss = loss * jnp.power(1.0 - pt, gamma)
    return -jnp.mean(loss)


if __name__ == "__main__":
    key = jax.random.PRNGKey(0)
    k1, k2, k3, k4, k5, k6 = jax.random.split(key, 6)

    # Case 1: default config, lane-aligned multi-label head (batch=16, 128 labels).
    # x plays the role of an already-sigmoided probability map in this module.
    x1 = jax.random.uniform(k1, (16, 128), jnp.float32, minval=0.001, maxval=0.999)
    y1 = (jax.random.uniform(k2, (16, 128)) > 0.7).astype(jnp.float32)
    out1 = jax.block_until_ready(asymmetric_loss(x1, y1))
    ref1 = jax.block_until_ready(_reference(x1, y1))
    assert jnp.allclose(out1, ref1, rtol=1e-5, atol=1e-5), (out1, ref1)

    # Case 2: forces a multi-block grid + in-kernel strip loop + gated tail
    # masking, with targets streamed as bf16 (no upcast in the kernel).
    x2 = jax.random.uniform(k3, (44, 128), jnp.float32, minval=0.001, maxval=0.999)
    y2 = (jax.random.uniform(k4, (44, 128)) > 0.7).astype(jnp.bfloat16)
    out2 = jax.block_until_ready(
        asymmetric_loss(x2, y2, target_block_bytes=16 * 1024, strip_rows=8))
    ref2 = jax.block_until_ready(_reference(x2, y2.astype(jnp.float32)))
    assert jnp.allclose(out2, ref2, rtol=1e-5, atol=1e-5), (out2, ref2)

    # Case 3: C not a multiple of 128 (full-extent lane fallback), clip=0,
    # gamma_pos=0 / gamma_neg=2 integer fast path.
    x3 = jax.random.uniform(k5, (10, 50), jnp.float32, minval=0.001, maxval=0.999)
    y3 = (jax.random.uniform(k6, (10, 50)) > 0.5).astype(jnp.float32)
    out3 = jax.block_until_ready(
        asymmetric_loss(x3, y3, gamma_neg=2, gamma_pos=0, clip=0.0))
    ref3 = jax.block_until_ready(
        _reference(x3, y3, gamma_neg=2, gamma_pos=0, clip=0.0))
    assert jnp.allclose(out3, ref3, rtol=1e-5, atol=1e-5), (out3, ref3)

    print("KERNEL_OK")
</pallas_src>

<mosaic_0001>
module attributes {stable_mosaic.version = 11 : i64} {
  func.func @_asl_kernel(%arg0: i32, %arg1: memref<16x128xf32, #tpu.memory_space<vmem>>, %arg2: memref<16x128xf32, #tpu.memory_space<vmem>>, %arg3: memref<1x1x128xf32, #tpu.memory_space<vmem>>) attributes {dimension_semantics = [#tpu.dimension_semantics<parallel>], iteration_bounds = array<i64: 1>, scalar_prefetch = 0 : i64, scratch_operands = 0 : i64, tpu.core_type = #tpu.core_type<tc>, window_params = [{transform_indices = @transform_0, window_bounds = array<i64: 16, 128>}, {transform_indices = @transform_1, window_bounds = array<i64: 16, 128>}, {transform_indices = @transform_2, window_bounds = array<i64: 1, 1, 128>}]} {
    %cst = arith.constant 0.000000e+00 : f32
    %0 = vector.broadcast %cst : f32 to vector<1x128xf32>
    %c0 = arith.constant 0 : index
    %c0_0 = arith.constant 0 : index
    %1 = vector.load %arg1[%c0, %c0_0] : memref<16x128xf32, #tpu.memory_space<vmem>>, vector<16x128xf32>
    %c0_1 = arith.constant 0 : index
    %c0_2 = arith.constant 0 : index
    %2 = vector.load %arg2[%c0_1, %c0_2] : memref<16x128xf32, #tpu.memory_space<vmem>>, vector<16x128xf32>
    %cst_3 = arith.constant 5.000000e-01 : f32
    %3 = vector.broadcast %cst_3 : f32 to vector<16x128xf32>
    %4 = arith.cmpf ogt, %2, %3 : vector<16x128xf32>
    %cst_4 = arith.constant 1.000000e+00 : f32
    %5 = vector.broadcast %cst_4 : f32 to vector<16x128xf32>
    %6 = arith.subf %5, %1 : vector<16x128xf32>
    %cst_5 = arith.constant 5.000000e-02 : f32
    %7 = vector.broadcast %cst_5 : f32 to vector<16x128xf32>
    %8 = arith.addf %6, %7 : vector<16x128xf32>
    %cst_6 = arith.constant 1.000000e+00 : f32
    %9 = vector.broadcast %cst_6 : f32 to vector<16x128xf32>
    %10 = arith.minimumf %8, %9 : vector<16x128xf32>
    %11 = arith.select %4, %1, %10 : vector<16x128xi1>, vector<16x128xf32>
    %cst_7 = arith.constant 9.99999993E-9 : f32
    %12 = vector.broadcast %cst_7 : f32 to vector<16x128xf32>
    %13 = arith.maximumf %11, %12 : vector<16x128xf32>
    %14 = math.log %13 : vector<16x128xf32>
    %cst_8 = arith.constant 1.000000e+00 : f32
    %15 = vector.broadcast %cst_8 : f32 to vector<16x128xf32>
    %16 = arith.subf %15, %11 : vector<16x128xf32>
    %17 = arith.mulf %16, %16 : vector<16x128xf32>
    %18 = arith.mulf %17, %17 : vector<16x128xf32>
    %19 = arith.select %4, %16, %18 : vector<16x128xi1>, vector<16x128xf32>
    %20 = arith.mulf %14, %19 : vector<16x128xf32>
    %cst_9 = arith.constant dense<0.000000e+00> : vector<128xf32>
    %21 = vector.multi_reduction <add>, %20, %cst_9 [0] : vector<16x128xf32> to vector<128xf32>
    %22 = vector.shape_cast %21 : vector<128xf32> to vector<1x128xf32>
    %23 = arith.addf %0, %22 : vector<1x128xf32>
    %24 = vector.shape_cast %23 : vector<1x128xf32> to vector<1x1x128xf32>
    %c0_10 = arith.constant 0 : index
    %c0_11 = arith.constant 0 : index
    %c0_12 = arith.constant 0 : index
    %25 = vector.load %arg3[%c0_10, %c0_11, %c0_12] : memref<1x1x128xf32, #tpu.memory_space<vmem>>, vector<1x1x128xf32>
    tpu.vector_store %arg3[%c0_10, %c0_11, %c0_12], %24 {strides = array<i32>} : memref<1x1x128xf32, #tpu.memory_space<vmem>>, vector<1x1x128xf32>,
    return
  }
  func.func @transform_0(%arg0: i32) -> (i32, i32) {
    %c0_i32 = arith.constant 0 : i32
    %c0_i32_0 = arith.constant 0 : i32
    return %arg0, %c0_i32 : i32, i32
  }
  func.func @transform_1(%arg0: i32) -> (i32, i32) {
    %c0_i32 = arith.constant 0 : i32
    %c0_i32_0 = arith.constant 0 : i32
    return %arg0, %c0_i32 : i32, i32
  }
  func.func @transform_2(%arg0: i32) -> (i32, i32, i32) {
    %c0_i32 = arith.constant 0 : i32
    %c0_i32_0 = arith.constant 0 : i32
    %c0_i32_1 = arith.constant 0 : i32
    return %arg0, %c0_i32, %c0_i32_0 : i32, i32, i32
  }
}

</mosaic_0001>

<llo_original>
// kernel: tpu_custom_call.1
$region0: #{tpu_custom_call.1}
  #allocation0 [shape = 'u32[]', space=smem, size = 0x4, offset = 0x4, fixed_abs, tag = 'smem constant byte address 0x4 - core index']
  #allocation1 [shape = 'u32[144,128]{1,0:T(1,128)}', space=vmem, size = 0x12000, scoped, tag = 'internal scratch']
  %s0 = inlined_call_operand.hbm [shape: f32[16,128], index: 0, kind: input, shape index: {}]
  %s1 = inlined_call_operand.hbm [shape: f32[16,128], index: 1, kind: input, shape index: {}]
  %s2 = inlined_call_operand.hbm [shape: f32[1,1,128], index: 2, kind: output, shape index: {}]
  %s3 = sld [smem:[#allocation0]]
  $region26: #{tpu_custom_call.1} parent=0
    _
  %s5 = ssub.s32 1, %s3
  %s6 = scalar_select 0, %s5, %s3
  $region1: #{tpu_custom_call.1} parent=0
    #allocation2 [shape = 'u8[8192]{0}', space=vmem, size = 0x2000, scoped, tag = 'input window, operand 0, single buffered']
    #allocation3 [shape = 's32[1]{0}', space=sflag, size = 0x4, scoped, tag = 'scoped memory for tpu_custom_call.1']
    #allocation4 [shape = 's32[1]{0}', space=sflag, size = 0x4, scoped, tag = 'scoped memory for tpu_custom_call.1']
    #allocation5 [shape = 'u8[8192]{0}', space=vmem, size = 0x2000, scoped, tag = 'input window, operand 1, single buffered']
    #allocation6 [shape = 's32[1]{0}', space=sflag, size = 0x4, scoped, tag = 'scoped memory for tpu_custom_call.1']
    #allocation7 [shape = 'u8[512]{0}', space=vmem, size = 0x400, scoped, tag = 'output window, operand 0, single buffered']
    %7 = vsyncpa [#allocation3], 0
    %8 = vsyncpa [#allocation6], 0
    %9 = vsyncpa [#allocation4], 0
    // Predicated region
    $region2: #{tpu_custom_call.1} parent=1 // pred_check
      _
    $region3: #{tpu_custom_call.1} parent=1 // pred_check_branch
      %11 = sbr.rel (0) target = $region5
    $region4: #{tpu_custom_call.1} parent=1 // pred_region
      %s13 = ssub.s32 256, 256
      %14 = vsyncadd [#allocation3], %s13
      %s15 = sshll.u32 [#allocation2], 4
      %s16 = int_to_ptr.vmem [resolvable:$true] %s15
      %21 = dma.hbm_to_vmem [thread:$0]  %s0, 256, %s16, [#allocation3], 128, 128, 8
    $region5: #{tpu_custom_call.1} parent=1 // pred_fallthru
      _
    // Predicated region
    $region6: #{tpu_custom_call.1} parent=1 // pred_check
      _
    $region7: #{tpu_custom_call.1} parent=1 // pred_check_branch
      %23 = sbr.rel (0) target = $region9
    $region8: #{tpu_custom_call.1} parent=1 // pred_region
      %s25 = ssub.s32 256, 256
      %26 = vsyncadd [#allocation6], %s25
      %s27 = sshll.u32 [#allocation5], 4
      %s28 = int_to_ptr.vmem [resolvable:$true] %s27
      %33 = dma.hbm_to_vmem [thread:$0]  %s1, 256, %s28, [#allocation6], 128, 128, 8
    $region9: #{tpu_custom_call.1} parent=1 // pred_fallthru
      _
    // Predicated region
    $region10: #{tpu_custom_call.1} parent=1 // pred_check
      _
    $region11: #{tpu_custom_call.1} parent=1 // pred_check_branch
      %35 = sbr.rel (0) target = $region13
    $region12: #{tpu_custom_call.1} parent=1 // pred_region
      %36 = dma.done [#allocation3], 256
    $region13: #{tpu_custom_call.1} parent=1 // pred_fallthru
      _
    // Predicated region
    $region14: #{tpu_custom_call.1} parent=1 // pred_check
      _
    $region15: #{tpu_custom_call.1} parent=1 // pred_check_branch
      %38 = sbr.rel (0) target = $region17
    $region16: #{tpu_custom_call.1} parent=1 // pred_region
      %39 = dma.done [#allocation6], 256
    $region17: #{tpu_custom_call.1} parent=1 // pred_fallthru
      _
    %v40 = vld [vmem:[#allocation2] sm:$0xff]
    %v41 = vld [vmem:[#allocation2 + $0x8] sm:$0xff]
    %v42 = vld [vmem:[#allocation5] sm:$0xff]
    %v43 = vld [vmem:[#allocation5 + $0x8] sm:$0xff]
    %vm44 = vcmp.gt.f32.partialorder %v42, 0.5
    %vm45 = vcmp.gt.f32.partialorder %v43, 0.5
    %v46 = vsub.f32 1.0, %v40
    %v47 = vsub.f32 1.0, %v41
    %v48 = vadd.f32 %v46, 0.05
    %v49 = vadd.f32 %v47, 0.05
    %v50 = vmin.f32 %v48, 1.0
    %v51 = vmin.f32 %v49, 1.0
    %v52 = vsel %vm44, %v40, %v50
    %v53 = vsel %vm45, %v41, %v51
    %v54 = vmax.f32 %v52, 1e-08
    %v55 = vmax.f32 %v53, 1e-08
    %v56 = vlog2.pop %v54
    %v57 = vmul.f32 %v56, 0.6931472
    %v58 = vlog2.pop %v55
    %v59 = vmul.f32 %v58, 0.6931472
    %v60 = vsub.f32 1.0, %v52
    %v61 = vsub.f32 1.0, %v53
    %v62 = vmul.f32 %v60, %v60
    %v63 = vmul.f32 %v61, %v61
    %v64 = vmul.f32 %v62, %v62
    %v65 = vmul.f32 %v63, %v63
    %v66 = vsel %vm44, %v60, %v64
    %v67 = vsel %vm45, %v61, %v65
    %v68 = vmul.f32 %v57, %v66
    %v69 = vmul.f32 %v59, %v67
    %v70 = vadd.f32 %v68, %v69
    %v71 = vrot.slane %v70, 4
    %v72 = vadd.f32 %v70, %v71
    %v73 = vrot.slane %v72, 2
    %v74 = vadd.f32 %v72, %v73
    %v75 = vrot.slane %v74, 1
    %v76 = vadd.f32 %v74, %v75
    %v77 = vadd.f32 %v76, 0.0
    %78 = vst [vmem:[#allocation7] sm:$0x1] %v77
    // Predicated region
    $region18: #{tpu_custom_call.1} parent=1 // pred_check
      _
    $region19: #{tpu_custom_call.1} parent=1 // pred_check_branch
      %80 = sbr.rel (0) target = $region21
    $region20: #{tpu_custom_call.1} parent=1 // pred_region
      %s82 = ssub.s32 16, 16
      %83 = vsyncadd [#allocation4], %s82
      %s85 = sshll.u32 [#allocation7], 4
      %s86 = int_to_ptr.vmem [resolvable:$true] %s85
      %88 = dma.vmem_to_hbm [thread:$0]  %s86, 16, %s2, [#allocation4]
    $region21: #{tpu_custom_call.1} parent=1 // pred_fallthru
      _
    // Predicated region
    $region22: #{tpu_custom_call.1} parent=1 // pred_check
      _
    $region23: #{tpu_custom_call.1} parent=1 // pred_check_branch
      %90 = sbr.rel (0) target = $region25
    $region24: #{tpu_custom_call.1} parent=1 // pred_region
      %91 = dma.done [#allocation4], 16
    $region25: #{tpu_custom_call.1} parent=1 // pred_fallthru
      _
    %92 = vsyncpa [#allocation3], 1
    %93 = vsyncpa [#allocation6], 1
    %94 = vsyncpa [#allocation4], 1

</llo_original>
